<compile_context>
chip_gen: v7x
topology: tpu7x:2x2x1
jax: 0.10.0
libtpu: 0.0.40
codegen_flags: <defaults>
</compile_context>

<pallas_src>
import math

import jax
import jax.numpy as jnp
from jax.experimental import pallas as pl
from jax.experimental.pallas import tpu as pltpu


def _softplus(x):
    # Matches F.softplus(beta=1, threshold=20) for the value ranges used here.
    safe = jnp.minimum(x, 20.0)
    return jnp.where(x > 20.0, x, jnp.log(1.0 + jnp.exp(safe)))


def _silu(x):
    return x * jax.nn.sigmoid(x)


def _mamba_step_kernel(
    x_ref,          # (Bt, d_model)                 f32  input token (= residual)
    conv_ref,       # (d_conv, Bt, d_inner)         f32  conv state, lane-dense
    ssm_ref,        # (Bt, d_state, d_inner)        f32  ssm state, lane-dense
    w_in_ref,       # (d_model, 2*d_inner)          bf16 in_proj, [x half | z half]
    w_xdtbc_ref,    # (d_inner, d_inner+2*d_state)  bf16 fused [dt_eff | B | C]
    a_t_ref,        # (d_state, d_inner)            f32  A^T = (-exp(A_log))^T
    w_out_ref,      # (d_inner, d_model)            bf16 out_proj
    vec_ref,        # (d_conv+3, d_inner)           f32  [conv taps; conv_b; dt_b; D]
    out_ref,        # (Bt, d_model)                 f32
    new_conv_ref,   # (d_conv, Bt, d_inner)         f32  (aliases conv_ref in HBM)
    new_ssm_ref,    # (Bt, d_state, d_inner)        f32  (aliases ssm_ref in HBM)
):
    f32 = jnp.float32
    bf16 = jnp.bfloat16
    d_inner = w_out_ref.shape[0]
    d_state = a_t_ref.shape[0]
    d_conv = conv_ref.shape[0]

    x_in = x_ref[...]                                                   # (Bt, d_model) f32

    # ---- in_proj: one matmul, split at lane offset d_inner (vreg-aligned) ----
    xz = jnp.dot(x_in.astype(bf16), w_in_ref[...],
                 preferred_element_type=f32)                            # (Bt, 2*d_inner)
    xp = xz[:, :d_inner]
    z = xz[:, d_inner:]

    # ---- causal-conv shift register + depthwise conv (d_conv small, unrolled) ----
    conv_prev = conv_ref[...]          # load the whole block BEFORE any in-place write
    taps = vec_ref[...]                                                  # (d_conv+3, d_inner)
    conv_out = xp * taps[d_conv - 1:d_conv] + taps[d_conv:d_conv + 1]
    for w in range(d_conv - 1):
        conv_out = conv_out + conv_prev[w + 1] * taps[w:w + 1]
    xc = _silu(conv_out)                                                 # (Bt, d_inner)

    for w in range(d_conv - 1):
        new_conv_ref[w] = conv_prev[w + 1]
    new_conv_ref[d_conv - 1] = xp

    # ---- fused x_proj + dt_proj: single MXU pass producing [dt | B | C] ----
    proj = jnp.dot(xc.astype(bf16), w_xdtbc_ref[...],
                   preferred_element_type=f32)                           # (Bt, d_inner+2*d_state)
    dt = _softplus(proj[:, :d_inner] + taps[d_conv + 1:d_conv + 2])      # (Bt, d_inner)
    bv = proj[:, d_inner:d_inner + d_state]                              # (Bt, d_state)
    cv = proj[:, d_inner + d_state:]                                     # (Bt, d_state)

    # ---- selective-SSM state update (lane-dense (Bt, d_state, d_inner)) ----
    dA = jnp.exp(dt[:, None, :] * a_t_ref[...][None, :, :])              # (Bt, d_state, d_inner)
    dBx = (dt * xc)[:, None, :] * bv[:, :, None]                         # (Bt, d_state, d_inner)
    ssm_new = ssm_ref[...] * dA + dBx
    new_ssm_ref[...] = ssm_new

    y = jnp.sum(ssm_new * cv[:, :, None], axis=1)                        # (Bt, d_inner)
    y = y + taps[d_conv + 2:d_conv + 3] * xc
    y = y * _silu(z)

    # ---- out_proj + residual (fused) ----
    out = jnp.dot(y.astype(bf16), w_out_ref[...],
                  preferred_element_type=f32)                            # (Bt, d_model)
    out_ref[...] = (out + x_in).astype(out_ref.dtype)


def to_kernel_state(conv_state, ssm_state):
    """PyTorch layout -> persistent kernel layout (do this ONCE, outside the decode loop)."""
    conv_k = jnp.transpose(conv_state, (2, 0, 1)).astype(jnp.float32)   # (d_conv, B, d_inner)
    ssm_k = jnp.transpose(ssm_state, (0, 2, 1)).astype(jnp.float32)     # (B, d_state, d_inner)
    return conv_k, ssm_k


def from_kernel_state(conv_k, ssm_k):
    """Kernel layout -> PyTorch layout (only needed when handing state back)."""
    return jnp.transpose(conv_k, (1, 2, 0)), jnp.transpose(ssm_k, (0, 2, 1))


def meta_mamba_forward(x, conv_k, ssm_k, params):
    """x: (B, 1, d_model); conv_k: (d_conv, B, d_inner); ssm_k: (B, d_state, d_inner).
    Returns (x + mamba.step(x), conv_k', ssm_k') with states kept in kernel layout."""
    B, L, d_model = x.shape
    assert L == 1, "Mamba.step handles a single token"
    d_conv, _, d_inner = conv_k.shape
    d_state = ssm_k.shape[1]

    b_tile = 8 if B % 8 == 0 else B
    nb = B // b_tile

    x2 = x[:, 0, :].astype(jnp.float32)

    full = lambda i: (0, 0)
    out, new_conv, new_ssm = pl.pallas_call(
        _mamba_step_kernel,
        grid=(nb,),
        out_shape=(
            jax.ShapeDtypeStruct((B, d_model), jnp.float32),
            jax.ShapeDtypeStruct((d_conv, B, d_inner), jnp.float32),
            jax.ShapeDtypeStruct((B, d_state, d_inner), jnp.float32),
        ),
        in_specs=[
            pl.BlockSpec((b_tile, d_model), lambda i: (i, 0)),
            pl.BlockSpec((d_conv, b_tile, d_inner), lambda i: (0, i, 0)),
            pl.BlockSpec((b_tile, d_state, d_inner), lambda i: (i, 0, 0)),
            pl.BlockSpec((d_model, 2 * d_inner), full),
            pl.BlockSpec((d_inner, d_inner + 2 * d_state), full),
            pl.BlockSpec((d_state, d_inner), full),
            pl.BlockSpec((d_inner, d_model), full),
            pl.BlockSpec((d_conv + 3, d_inner), full),
        ],
        out_specs=(
            pl.BlockSpec((b_tile, d_model), lambda i: (i, 0)),
            pl.BlockSpec((d_conv, b_tile, d_inner), lambda i: (0, i, 0)),
            pl.BlockSpec((b_tile, d_state, d_inner), lambda i: (i, 0, 0)),
        ),
        input_output_aliases={1: 1, 2: 2},      # conv/ssm state update in place
        compiler_params=pltpu.CompilerParams(
            dimension_semantics=("parallel",),  # batch tiles shard across TCs on v7x
            vmem_limit_bytes=32 * 1024 * 1024),
    )(x2, conv_k, ssm_k,
      params["w_in"], params["w_xdtbc"], params["a_t"], params["w_out"], params["vecs"])

    return out[:, None, :], new_conv, new_ssm


def init_params(d_model, d_state, d_conv, expand, key):
    """Deterministic params in torch layout (raw) + fused/packed kernel params."""
    d_inner = expand * d_model
    dt_rank = math.ceil(d_model / 16)
    keys = jax.random.split(key, 7)

    def u(k, shape, s):
        return jax.random.uniform(k, shape, jnp.float32, -s, s)

    raw = dict(
        in_proj_weight=u(keys[0], (2 * d_inner, d_model), 1.0 / math.sqrt(d_model)),
        conv1d_weight=u(keys[1], (d_inner, 1, d_conv), 1.0 / math.sqrt(d_conv)),
        conv1d_bias=u(keys[2], (d_inner,), 1.0 / math.sqrt(d_conv)),
        x_proj_weight=u(keys[3], (dt_rank + 2 * d_state, d_inner), 1.0 / math.sqrt(d_inner)),
        dt_proj_weight=u(keys[4], (d_inner, dt_rank), dt_rank ** -0.5),
        dt_proj_bias=u(keys[5], (d_inner,), 1.0),
        A_log=jnp.log(jnp.broadcast_to(
            jnp.arange(1, d_state + 1, dtype=jnp.float32), (d_inner, d_state))),
        D=jnp.ones((d_inner,), jnp.float32),
        out_proj_weight=u(keys[6], (d_model, d_inner), 1.0 / math.sqrt(d_inner)),
    )

    A = -jnp.exp(raw["A_log"])                                        # (d_inner, d_state)

    # Fold dt_proj into x_proj:  dt_pre = xc @ (W_x_dt^T @ W_dt^T)  -> (d_inner, d_inner)
    w_dt_eff = raw["x_proj_weight"][:dt_rank].T @ raw["dt_proj_weight"].T
    w_xdtbc = jnp.concatenate(
        [w_dt_eff,                                                    # dt   (d_inner cols)
         raw["x_proj_weight"][dt_rank:dt_rank + d_state].T,           # B    (d_state cols)
         raw["x_proj_weight"][dt_rank + d_state:].T],                 # C    (d_state cols)
        axis=1)                                                       # (d_inner, d_inner+2*d_state)

    # Small per-channel vectors packed into one f32 slab: [taps(d_conv); conv_b; dt_b; D]
    vecs = jnp.concatenate(
        [jnp.transpose(raw["conv1d_weight"][:, 0, :], (1, 0)),        # (d_conv, d_inner)
         raw["conv1d_bias"][None, :],
         raw["dt_proj_bias"][None, :],
         raw["D"][None, :]],
        axis=0)                                                       # (d_conv+3, d_inner)

    packed = dict(
        w_in=raw["in_proj_weight"].T.astype(jnp.bfloat16),            # (d_model, 2*d_inner)
        w_xdtbc=w_xdtbc.astype(jnp.bfloat16),                         # (d_inner, d_inner+2*d_state)
        a_t=A.T,                                                      # (d_state, d_inner) f32
        w_out=raw["out_proj_weight"].T.astype(jnp.bfloat16),          # (d_inner, d_model)
        vecs=vecs,                                                    # f32
    )
    return raw, packed


def reference_forward(x, conv_state, ssm_state, raw):
    """Pure-JAX f32 reference mirroring mamba_ssm Mamba.step (slow path) + residual."""
    d_inner, d_state = raw["A_log"].shape
    dt_rank = raw["dt_proj_weight"].shape[1]

    xz = x[:, 0, :] @ raw["in_proj_weight"].T                          # (B, 2*d_inner)
    xp, z = xz[:, :d_inner], xz[:, d_inner:]

    cs = jnp.roll(conv_state, shift=-1, axis=-1)
    cs = cs.at[:, :, -1].set(xp)
    cw = raw["conv1d_weight"][:, 0, :]                                 # (d_inner, d_conv)
    xc = jnp.sum(cs * cw[None], axis=-1) + raw["conv1d_bias"]
    xc = xc * jax.nn.sigmoid(xc)                                       # SiLU

    x_db = xc @ raw["x_proj_weight"].T
    dt_low = x_db[:, :dt_rank]
    Bv = x_db[:, dt_rank:dt_rank + d_state]
    Cv = x_db[:, dt_rank + d_state:]
    dt = _softplus(dt_low @ raw["dt_proj_weight"].T + raw["dt_proj_bias"])

    A = -jnp.exp(raw["A_log"])
    dA = jnp.exp(dt[:, :, None] * A[None])                             # (B, d_inner, d_state)
    dB = dt[:, :, None] * Bv[:, None, :]
    ssm_new = ssm_state * dA + xc[:, :, None] * dB
    y = jnp.einsum("bdn,bn->bd", ssm_new, Cv)
    y = y + raw["D"][None, :] * xc
    y = y * (z * jax.nn.sigmoid(z))
    out = y @ raw["out_proj_weight"].T
    return out[:, None, :] + x, cs, ssm_new


if __name__ == "__main__":
    d_model, d_state, d_conv, expand = 32, 16, 4, 4     # d_inner = 128 (one full lane group)
    d_inner = expand * d_model
    batch = 8                                            # sublane-aligned batch

    key = jax.random.PRNGKey(0)
    k_param, k_x, k_conv, k_ssm = jax.random.split(key, 4)
    raw, packed = init_params(d_model, d_state, d_conv, expand, k_param)

    x = jax.random.normal(k_x, (batch, 1, d_model), jnp.float32)
    conv_state = 0.1 * jax.random.normal(k_conv, (batch, d_inner, d_conv), jnp.float32)
    ssm_state = 0.1 * jax.random.normal(k_ssm, (batch, d_inner, d_state), jnp.float32)

    # Convert once into the persistent kernel layout (stays there across decode steps).
    conv_k, ssm_k = to_kernel_state(conv_state, ssm_state)

    fwd = jax.jit(meta_mamba_forward)
    y, new_conv_k, new_ssm_k = fwd(x, conv_k, ssm_k, packed)
    y = jax.block_until_ready(y)
    new_conv_k = jax.block_until_ready(new_conv_k)
    new_ssm_k = jax.block_until_ready(new_ssm_k)

    new_conv, new_ssm = from_kernel_state(new_conv_k, new_ssm_k)
    y_ref, conv_ref, ssm_ref = reference_forward(x, conv_state, ssm_state, raw)

    assert y.shape == (batch, 1, d_model)
    assert new_conv.shape == (batch, d_inner, d_conv)
    assert new_ssm.shape == (batch, d_inner, d_state)
    # bf16 weights/activations (f32 accumulation) -> relaxed tolerance vs f32 reference.
    tol = dict(atol=5e-2, rtol=5e-2)
    assert jnp.allclose(y, y_ref, **tol), float(jnp.max(jnp.abs(y - y_ref)))
    assert jnp.allclose(new_conv, conv_ref, **tol), float(jnp.max(jnp.abs(new_conv - conv_ref)))
    assert jnp.allclose(new_ssm, ssm_ref, **tol), float(jnp.max(jnp.abs(new_ssm - ssm_ref)))

    print("KERNEL_OK")
</pallas_src>

<mosaic_0001>
module attributes {stable_mosaic.version = 11 : i64} {
  func.func @_mamba_step_kernel(%arg0: i32, %arg1: memref<8x32xf32, #tpu.memory_space<vmem>>, %arg2: memref<4x8x128xf32, #tpu.memory_space<vmem>>, %arg3: memref<8x16x128xf32, #tpu.memory_space<vmem>>, %arg4: memref<32x256xbf16, #tpu.memory_space<vmem>>, %arg5: memref<128x160xbf16, #tpu.memory_space<vmem>>, %arg6: memref<16x128xf32, #tpu.memory_space<vmem>>, %arg7: memref<128x32xbf16, #tpu.memory_space<vmem>>, %arg8: memref<7x128xf32, #tpu.memory_space<vmem>>, %arg9: memref<8x32xf32, #tpu.memory_space<vmem>>, %arg10: memref<4x8x128xf32, #tpu.memory_space<vmem>>, %arg11: memref<8x16x128xf32, #tpu.memory_space<vmem>>) attributes {dimension_semantics = [#tpu.dimension_semantics<parallel>], iteration_bounds = array<i64: 1>, scalar_prefetch = 0 : i64, scratch_operands = 0 : i64, tpu.core_type = #tpu.core_type<tc>, window_params = [{transform_indices = @transform_0, window_bounds = array<i64: 8, 32>}, {transform_indices = @transform_1, window_bounds = array<i64: 4, 8, 128>}, {transform_indices = @transform_2, window_bounds = array<i64: 8, 16, 128>}, {pipeline_mode = #tpu.pipeline_mode<synchronous>, transform_indices = @transform_3, window_bounds = array<i64: 32, 256>}, {pipeline_mode = #tpu.pipeline_mode<synchronous>, transform_indices = @transform_4, window_bounds = array<i64: 128, 160>}, {pipeline_mode = #tpu.pipeline_mode<synchronous>, transform_indices = @transform_5, window_bounds = array<i64: 16, 128>}, {pipeline_mode = #tpu.pipeline_mode<synchronous>, transform_indices = @transform_6, window_bounds = array<i64: 128, 32>}, {pipeline_mode = #tpu.pipeline_mode<synchronous>, transform_indices = @transform_7, window_bounds = array<i64: 7, 128>}, {transform_indices = @transform_8, window_bounds = array<i64: 8, 32>}, {transform_indices = @transform_9, window_bounds = array<i64: 4, 8, 128>}, {transform_indices = @transform_10, window_bounds = array<i64: 8, 16, 128>}]} {
    %c0 = arith.constant 0 : index
    %c0_0 = arith.constant 0 : index
    %0 = vector.load %arg1[%c0, %c0_0] : memref<8x32xf32, #tpu.memory_space<vmem>>, vector<8x32xf32>
    %1 = arith.truncf %0 : vector<8x32xf32> to vector<8x32xbf16>
    %c0_1 = arith.constant 0 : index
    %c0_2 = arith.constant 0 : index
    %2 = vector.load %arg4[%c0_1, %c0_2] : memref<32x256xbf16, #tpu.memory_space<vmem>>, vector<32x256xbf16>
    %cst = arith.constant dense<0.000000e+00> : vector<8x256xf32>
    %3 = tpu.matmul %1, %2, %cst {dimension_numbers = #tpu.dot_dimension_numbers<[1], [0], [0], [1], [0, 0, 1, 1], [], []>} : vector<8x32xbf16>, vector<32x256xbf16>, vector<8x256xf32> -> vector<8x256xf32>
    %4 = vector.extract_strided_slice %3 {offsets = [0, 0], sizes = [8, 128], strides = [1, 1]} : vector<8x256xf32> to vector<8x128xf32>
    %5 = vector.extract_strided_slice %3 {offsets = [0, 128], sizes = [8, 128], strides = [1, 1]} : vector<8x256xf32> to vector<8x128xf32>
    %c0_3 = arith.constant 0 : index
    %c0_4 = arith.constant 0 : index
    %c0_5 = arith.constant 0 : index
    %6 = vector.load %arg2[%c0_3, %c0_4, %c0_5] : memref<4x8x128xf32, #tpu.memory_space<vmem>>, vector<4x8x128xf32>
    %c0_6 = arith.constant 0 : index
    %c0_7 = arith.constant 0 : index
    %7 = vector.load %arg8[%c0_6, %c0_7] : memref<7x128xf32, #tpu.memory_space<vmem>>, vector<7x128xf32>
    %8 = vector.extract_strided_slice %7 {offsets = [3, 0], sizes = [1, 128], strides = [1, 1]} : vector<7x128xf32> to vector<1x128xf32>
    %9 = vector.broadcast %8 : vector<1x128xf32> to vector<8x128xf32>
    %10 = arith.mulf %4, %9 : vector<8x128xf32>
    %11 = vector.extract_strided_slice %7 {offsets = [4, 0], sizes = [1, 128], strides = [1, 1]} : vector<7x128xf32> to vector<1x128xf32>
    %12 = vector.broadcast %11 : vector<1x128xf32> to vector<8x128xf32>
    %13 = arith.addf %10, %12 : vector<8x128xf32>
    %14 = vector.extract_strided_slice %6 {offsets = [1, 0, 0], sizes = [1, 8, 128], strides = [1, 1, 1]} : vector<4x8x128xf32> to vector<1x8x128xf32>
    %15 = vector.shape_cast %14 : vector<1x8x128xf32> to vector<8x128xf32>
    %16 = vector.extract_strided_slice %7 {offsets = [0, 0], sizes = [1, 128], strides = [1, 1]} : vector<7x128xf32> to vector<1x128xf32>
    %17 = vector.broadcast %16 : vector<1x128xf32> to vector<8x128xf32>
    %18 = arith.mulf %15, %17 : vector<8x128xf32>
    %19 = arith.addf %13, %18 : vector<8x128xf32>
    %20 = vector.extract_strided_slice %6 {offsets = [2, 0, 0], sizes = [1, 8, 128], strides = [1, 1, 1]} : vector<4x8x128xf32> to vector<1x8x128xf32>
    %21 = vector.shape_cast %20 : vector<1x8x128xf32> to vector<8x128xf32>
    %22 = vector.extract_strided_slice %7 {offsets = [1, 0], sizes = [1, 128], strides = [1, 1]} : vector<7x128xf32> to vector<1x128xf32>
    %23 = vector.broadcast %22 : vector<1x128xf32> to vector<8x128xf32>
    %24 = arith.mulf %21, %23 : vector<8x128xf32>
    %25 = arith.addf %19, %24 : vector<8x128xf32>
    %26 = vector.extract_strided_slice %6 {offsets = [3, 0, 0], sizes = [1, 8, 128], strides = [1, 1, 1]} : vector<4x8x128xf32> to vector<1x8x128xf32>
    %27 = vector.shape_cast %26 : vector<1x8x128xf32> to vector<8x128xf32>
    %28 = vector.extract_strided_slice %7 {offsets = [2, 0], sizes = [1, 128], strides = [1, 1]} : vector<7x128xf32> to vector<1x128xf32>
    %29 = vector.broadcast %28 : vector<1x128xf32> to vector<8x128xf32>
    %30 = arith.mulf %27, %29 : vector<8x128xf32>
    %31 = arith.addf %25, %30 : vector<8x128xf32>
    %32 = arith.negf %31 : vector<8x128xf32>
    %33 = math.exp %32 : vector<8x128xf32>
    %cst_8 = arith.constant 1.000000e+00 : f32
    %34 = vector.broadcast %cst_8 : f32 to vector<8x128xf32>
    %35 = arith.addf %34, %33 : vector<8x128xf32>
    %36 = arith.divf %34, %35 : vector<8x128xf32>
    %37 = arith.mulf %31, %36 : vector<8x128xf32>
    %38 = vector.extract_strided_slice %6 {offsets = [1, 0, 0], sizes = [1, 8, 128], strides = [1, 1, 1]} : vector<4x8x128xf32> to vector<1x8x128xf32>
    %39 = vector.shape_cast %38 : vector<1x8x128xf32> to vector<8x128xf32>
    %c0_9 = arith.constant 0 : index
    %c0_10 = arith.constant 0 : index
    %c0_11 = arith.constant 0 : index
    %40 = vector.load %arg10[%c0_9, %c0_10, %c0_11] : memref<4x8x128xf32, #tpu.memory_space<vmem>>, vector<1x8x128xf32>
    %41 = vector.shape_cast %40 : vector<1x8x128xf32> to vector<8x128xf32>
    %42 = vector.shape_cast %39 : vector<8x128xf32> to vector<1x8x128xf32>
    tpu.vector_store %arg10[%c0_9, %c0_10, %c0_11], %42 {strides = array<i32>} : memref<4x8x128xf32, #tpu.memory_space<vmem>>, vector<1x8x128xf32>,
    %43 = vector.extract_strided_slice %6 {offsets = [2, 0, 0], sizes = [1, 8, 128], strides = [1, 1, 1]} : vector<4x8x128xf32> to vector<1x8x128xf32>
    %44 = vector.shape_cast %43 : vector<1x8x128xf32> to vector<8x128xf32>
    %c1 = arith.constant 1 : index
    %c0_12 = arith.constant 0 : index
    %c0_13 = arith.constant 0 : index
    %45 = vector.load %arg10[%c1, %c0_12, %c0_13] : memref<4x8x128xf32, #tpu.memory_space<vmem>>, vector<1x8x128xf32>
    %46 = vector.shape_cast %45 : vector<1x8x128xf32> to vector<8x128xf32>
    %47 = vector.shape_cast %44 : vector<8x128xf32> to vector<1x8x128xf32>
    tpu.vector_store %arg10[%c1, %c0_12, %c0_13], %47 {strides = array<i32>} : memref<4x8x128xf32, #tpu.memory_space<vmem>>, vector<1x8x128xf32>,
    %48 = vector.extract_strided_slice %6 {offsets = [3, 0, 0], sizes = [1, 8, 128], strides = [1, 1, 1]} : vector<4x8x128xf32> to vector<1x8x128xf32>
    %49 = vector.shape_cast %48 : vector<1x8x128xf32> to vector<8x128xf32>
    %c2 = arith.constant 2 : index
    %c0_14 = arith.constant 0 : index
    %c0_15 = arith.constant 0 : index
    %50 = vector.load %arg10[%c2, %c0_14, %c0_15] : memref<4x8x128xf32, #tpu.memory_space<vmem>>, vector<1x8x128xf32>
    %51 = vector.shape_cast %50 : vector<1x8x128xf32> to vector<8x128xf32>
    %52 = vector.shape_cast %49 : vector<8x128xf32> to vector<1x8x128xf32>
    tpu.vector_store %arg10[%c2, %c0_14, %c0_15], %52 {strides = array<i32>} : memref<4x8x128xf32, #tpu.memory_space<vmem>>, vector<1x8x128xf32>,
    %c3 = arith.constant 3 : index
    %c0_16 = arith.constant 0 : index
    %c0_17 = arith.constant 0 : index
    %53 = vector.load %arg10[%c3, %c0_16, %c0_17] : memref<4x8x128xf32, #tpu.memory_space<vmem>>, vector<1x8x128xf32>
    %54 = vector.shape_cast %53 : vector<1x8x128xf32> to vector<8x128xf32>
    %55 = vector.shape_cast %4 : vector<8x128xf32> to vector<1x8x128xf32>
    tpu.vector_store %arg10[%c3, %c0_16, %c0_17], %55 {strides = array<i32>} : memref<4x8x128xf32, #tpu.memory_space<vmem>>, vector<1x8x128xf32>,
    %56 = arith.truncf %37 : vector<8x128xf32> to vector<8x128xbf16>
    %c0_18 = arith.constant 0 : index
    %c0_19 = arith.constant 0 : index
    %57 = vector.load %arg5[%c0_18, %c0_19] : memref<128x160xbf16, #tpu.memory_space<vmem>>, vector<128x160xbf16>
    %cst_20 = arith.constant dense<0.000000e+00> : vector<8x160xf32>
    %58 = tpu.matmul %56, %57, %cst_20 {dimension_numbers = #tpu.dot_dimension_numbers<[1], [0], [0], [1], [0, 0, 1, 1], [], []>} : vector<8x128xbf16>, vector<128x160xbf16>, vector<8x160xf32> -> vector<8x160xf32>
    %59 = vector.extract_strided_slice %58 {offsets = [0, 0], sizes = [8, 128], strides = [1, 1]} : vector<8x160xf32> to vector<8x128xf32>
    %60 = vector.extract_strided_slice %7 {offsets = [5, 0], sizes = [1, 128], strides = [1, 1]} : vector<7x128xf32> to vector<1x128xf32>
    %61 = vector.broadcast %60 : vector<1x128xf32> to vector<8x128xf32>
    %62 = arith.addf %59, %61 : vector<8x128xf32>
    %cst_21 = arith.constant 2.000000e+01 : f32
    %63 = vector.broadcast %cst_21 : f32 to vector<8x128xf32>
    %64 = arith.minimumf %62, %63 : vector<8x128xf32>
    %cst_22 = arith.constant 2.000000e+01 : f32
    %65 = vector.broadcast %cst_22 : f32 to vector<8x128xf32>
    %66 = arith.cmpf ogt, %62, %65 : vector<8x128xf32>
    %67 = math.exp %64 : vector<8x128xf32>
    %cst_23 = arith.constant 1.000000e+00 : f32
    %68 = vector.broadcast %cst_23 : f32 to vector<8x128xf32>
    %69 = arith.addf %68, %67 : vector<8x128xf32>
    %70 = math.log %69 : vector<8x128xf32>
    %71 = arith.select %66, %62, %70 : vector<8x128xi1>, vector<8x128xf32>
    %72 = vector.extract_strided_slice %58 {offsets = [0, 128], sizes = [8, 16], strides = [1, 1]} : vector<8x160xf32> to vector<8x16xf32>
    %73 = vector.extract_strided_slice %58 {offsets = [0, 144], sizes = [8, 16], strides = [1, 1]} : vector<8x160xf32> to vector<8x16xf32>
    %74 = vector.shape_cast %71 : vector<8x128xf32> to vector<8x1x128xf32>
    %c0_24 = arith.constant 0 : index
    %c0_25 = arith.constant 0 : index
    %75 = vector.load %arg6[%c0_24, %c0_25] : memref<16x128xf32, #tpu.memory_space<vmem>>, vector<16x128xf32>
    %76 = vector.shape_cast %75 : vector<16x128xf32> to vector<1x16x128xf32>
    %77 = vector.broadcast %74 : vector<8x1x128xf32> to vector<8x16x128xf32>
    %78 = vector.broadcast %76 : vector<1x16x128xf32> to vector<8x16x128xf32>
    %79 = arith.mulf %77, %78 : vector<8x16x128xf32>
    %80 = math.exp %79 : vector<8x16x128xf32>
    %81 = arith.mulf %71, %37 : vector<8x128xf32>
    %82 = vector.shape_cast %81 : vector<8x128xf32> to vector<8x1x128xf32>
    %83 = vector.shape_cast %72 : vector<8x16xf32> to vector<8x16x1xf32>
    %84 = vector.broadcast %82 : vector<8x1x128xf32> to vector<8x16x128xf32>
    %85 = vector.broadcast %83 : vector<8x16x1xf32> to vector<8x16x128xf32>
    %86 = arith.mulf %84, %85 : vector<8x16x128xf32>
    %c0_26 = arith.constant 0 : index
    %c0_27 = arith.constant 0 : index
    %c0_28 = arith.constant 0 : index
    %87 = vector.load %arg3[%c0_26, %c0_27, %c0_28] : memref<8x16x128xf32, #tpu.memory_space<vmem>>, vector<8x16x128xf32>
    %88 = arith.mulf %87, %80 : vector<8x16x128xf32>
    %89 = arith.addf %88, %86 : vector<8x16x128xf32>
    %c0_29 = arith.constant 0 : index
    %c0_30 = arith.constant 0 : index
    %c0_31 = arith.constant 0 : index
    %90 = vector.load %arg11[%c0_29, %c0_30, %c0_31] : memref<8x16x128xf32, #tpu.memory_space<vmem>>, vector<8x16x128xf32>
    tpu.vector_store %arg11[%c0_29, %c0_30, %c0_31], %89 {strides = array<i32>} : memref<8x16x128xf32, #tpu.memory_space<vmem>>, vector<8x16x128xf32>,
    %91 = vector.shape_cast %73 : vector<8x16xf32> to vector<8x16x1xf32>
    %92 = vector.broadcast %91 : vector<8x16x1xf32> to vector<8x16x128xf32>
    %93 = arith.mulf %89, %92 : vector<8x16x128xf32>
    %cst_32 = arith.constant dense<0.000000e+00> : vector<8x128xf32>
    %94 = vector.multi_reduction <add>, %93, %cst_32 [1] : vector<8x16x128xf32> to vector<8x128xf32>
    %95 = vector.extract_strided_slice %7 {offsets = [6, 0], sizes = [1, 128], strides = [1, 1]} : vector<7x128xf32> to vector<1x128xf32>
    %96 = vector.broadcast %95 : vector<1x128xf32> to vector<8x128xf32>
    %97 = arith.mulf %96, %37 : vector<8x128xf32>
    %98 = arith.addf %94, %97 : vector<8x128xf32>
    %99 = arith.negf %5 : vector<8x128xf32>
    %100 = math.exp %99 : vector<8x128xf32>
    %cst_33 = arith.constant 1.000000e+00 : f32
    %101 = vector.broadcast %cst_33 : f32 to vector<8x128xf32>
    %102 = arith.addf %101, %100 : vector<8x128xf32>
    %103 = arith.divf %101, %102 : vector<8x128xf32>
    %104 = arith.mulf %5, %103 : vector<8x128xf32>
    %105 = arith.mulf %98, %104 : vector<8x128xf32>
    %106 = arith.truncf %105 : vector<8x128xf32> to vector<8x128xbf16>
    %c0_34 = arith.constant 0 : index
    %c0_35 = arith.constant 0 : index
    %107 = vector.load %arg7[%c0_34, %c0_35] : memref<128x32xbf16, #tpu.memory_space<vmem>>, vector<128x32xbf16>
    %cst_36 = arith.constant dense<0.000000e+00> : vector<8x32xf32>
    %108 = tpu.matmul %106, %107, %cst_36 {dimension_numbers = #tpu.dot_dimension_numbers<[1], [0], [0], [1], [0, 0, 1, 1], [], []>} : vector<8x128xbf16>, vector<128x32xbf16>, vector<8x32xf32> -> vector<8x32xf32>
    %109 = arith.addf %108, %0 : vector<8x32xf32>
    %c0_37 = arith.constant 0 : index
    %c0_38 = arith.constant 0 : index
    %110 = vector.load %arg9[%c0_37, %c0_38] : memref<8x32xf32, #tpu.memory_space<vmem>>, vector<8x32xf32>
    tpu.vector_store %arg9[%c0_37, %c0_38], %109 {strides = array<i32>} : memref<8x32xf32, #tpu.memory_space<vmem>>, vector<8x32xf32>,
    return
  }
  func.func @transform_0(%arg0: i32) -> (i32, i32) {
    %c0_i32 = arith.constant 0 : i32
    %c0_i32_0 = arith.constant 0 : i32
    return %arg0, %c0_i32 : i32, i32
  }
  func.func @transform_1(%arg0: i32) -> (i32, i32, i32) {
    %c0_i32 = arith.constant 0 : i32
    %c0_i32_0 = arith.constant 0 : i32
    %c0_i32_1 = arith.constant 0 : i32
    return %c0_i32, %arg0, %c0_i32_0 : i32, i32, i32
  }
  func.func @transform_2(%arg0: i32) -> (i32, i32, i32) {
    %c0_i32 = arith.constant 0 : i32
    %c0_i32_0 = arith.constant 0 : i32
    %c0_i32_1 = arith.constant 0 : i32
    return %arg0, %c0_i32, %c0_i32_0 : i32, i32, i32
  }
  func.func @transform_3(%arg0: i32) -> (i32, i32) {
    %c0_i32 = arith.constant 0 : i32
    %c0_i32_0 = arith.constant 0 : i32
    %c0_i32_1 = arith.constant 0 : i32
    return %c0_i32, %c0_i32_0 : i32, i32
  }
  func.func @transform_4(%arg0: i32) -> (i32, i32) {
    %c0_i32 = arith.constant 0 : i32
    %c0_i32_0 = arith.constant 0 : i32
    %c0_i32_1 = arith.constant 0 : i32
    return %c0_i32, %c0_i32_0 : i32, i32
  }
  func.func @transform_5(%arg0: i32) -> (i32, i32) {
    %c0_i32 = arith.constant 0 : i32
    %c0_i32_0 = arith.constant 0 : i32
    %c0_i32_1 = arith.constant 0 : i32
    return %c0_i32, %c0_i32_0 : i32, i32
  }
  func.func @transform_6(%arg0: i32) -> (i32, i32) {
    %c0_i32 = arith.constant 0 : i32
    %c0_i32_0 = arith.constant 0 : i32
    %c0_i32_1 = arith.constant 0 : i32
    return %c0_i32, %c0_i32_0 : i32, i32
  }
  func.func @transform_7(%arg0: i32) -> (i32, i32) {
    %c0_i32 = arith.constant 0 : i32
    %c0_i32_0 = arith.constant 0 : i32
    %c0_i32_1 = arith.constant 0 : i32
    return %c0_i32, %c0_i32_0 : i32, i32
  }
  func.func @transform_8(%arg0: i32) -> (i32, i32) {
    %c0_i32 = arith.constant 0 : i32
    %c0_i32_0 = arith.constant 0 : i32
    return %arg0, %c0_i32 : i32, i32
  }
  func.func @transform_9(%arg0: i32) -> (i32, i32, i32) {
    %c0_i32 = arith.constant 0 : i32
    %c0_i32_0 = arith.constant 0 : i32
    %c0_i32_1 = arith.constant 0 : i32
    return %c0_i32, %arg0, %c0_i32_0 : i32, i32, i32
  }
  func.func @transform_10(%arg0: i32) -> (i32, i32, i32) {
    %c0_i32 = arith.constant 0 : i32
    %c0_i32_0 = arith.constant 0 : i32
    %c0_i32_1 = arith.constant 0 : i32
    return %arg0, %c0_i32, %c0_i32_0 : i32, i32, i32
  }
}

</mosaic_0001>

<llo_original>
// kernel: meta_mamba_forward.1
$region0: #{meta_mamba_forward.1}
  #allocation0 [shape = 'u32[]', space=smem, size = 0x4, offset = 0x4, fixed_abs, tag = 'smem constant byte address 0x4 - core index']
  #allocation1 [shape = 'u32[144,128]{1,0:T(1,128)}', space=vmem, size = 0x12000, scoped, tag = 'internal scratch']
  %s0 = inlined_call_operand.vmem [shape: f32[8,32], index: 0, kind: input, shape index: {}]
  %s1 = inlined_call_operand.vmem [shape: f32[4,8,128], index: 1, kind: input, shape index: {}, may-alias: {1,9}]
  %s2 = inlined_call_operand.vmem [shape: f32[8,16,128], index: 2, kind: input, shape index: {}, may-alias: {2,10}]
  %s3 = inlined_call_operand.vmem [shape: bf16[32,256], index: 3, kind: input, shape index: {}]
  %s4 = inlined_call_operand.vmem [shape: bf16[128,160], index: 4, kind: input, shape index: {}]
  %s5 = inlined_call_operand.vmem [shape: f32[16,128], index: 5, kind: input, shape index: {}]
  %s6 = inlined_call_operand.vmem [shape: bf16[128,32], index: 6, kind: input, shape index: {}]
  %s7 = inlined_call_operand.vmem [shape: f32[7,128], index: 7, kind: input, shape index: {}]
  %s8 = inlined_call_operand.hbm [shape: f32[8,32], index: 8, kind: output, shape index: {0}]
  %s9 = inlined_call_operand.vmem [shape: f32[4,8,128], index: 9, kind: output, shape index: {1}, may-alias: {1,9}]
  %s10 = inlined_call_operand.vmem [shape: f32[8,16,128], index: 10, kind: output, shape index: {2}, may-alias: {2,10}]
  %11 = xla_tuple %s8, %s9, %s10
  %s12 = sld [smem:[#allocation0]]
  $region58: #{meta_mamba_forward.1} parent=0
    _
  %s14 = ssub.s32 1, %s12
  %s15 = scalar_select 0, %s14, %s12
  $region1: #{meta_mamba_forward.1} parent=0
    #allocation2 [shape = 'u8[4096]{0}', space=vmem, size = 0x1000, scoped, tag = 'output window, operand 0, single buffered']
    #allocation3 [shape = 's32[1]{0}', space=sflag, size = 0x4, scoped, tag = 'scoped memory for meta_mamba_forward.1']
    %16 = vsyncpa [#allocation3], 0
    // Predicated region
    $region2: #{meta_mamba_forward.1} parent=1 // pred_check
      _
    $region3: #{meta_mamba_forward.1} parent=1 // pred_check_branch
      %18 = sbr.rel (0) target = $region5
    $region4: #{meta_mamba_forward.1} parent=1 // pred_region
      _
    $region5: #{meta_mamba_forward.1} parent=1 // pred_fallthru
      _
    // Predicated region
    $region6: #{meta_mamba_forward.1} parent=1 // pred_check
      _
    $region7: #{meta_mamba_forward.1} parent=1 // pred_check_branch
      %20 = sbr.rel (0) target = $region9
    $region8: #{meta_mamba_forward.1} parent=1 // pred_region
      _
    $region9: #{meta_mamba_forward.1} parent=1 // pred_fallthru
      _
    // Predicated region
    $region10: #{meta_mamba_forward.1} parent=1 // pred_check
      _
    $region11: #{meta_mamba_forward.1} parent=1 // pred_check_branch
      %22 = sbr.rel (0) target = $region13
    $region12: #{meta_mamba_forward.1} parent=1 // pred_region
      _
    $region13: #{meta_mamba_forward.1} parent=1 // pred_fallthru
      _
    // Predicated region
    $region14: #{meta_mamba_forward.1} parent=1 // pred_check
      _
    $region15: #{meta_mamba_forward.1} parent=1 // pred_check_branch
      %24 = sbr.rel (0) target = $region17
    $region16: #{meta_mamba_forward.1} parent=1 // pred_region
      _
    $region17: #{meta_mamba_forward.1} parent=1 // pred_fallthru
      _
    // Predicated region
    $region18: #{meta_mamba_forward.1} parent=1 // pred_check
      _
    $region19: #{meta_mamba_forward.1} parent=1 // pred_check_branch
      %26 = sbr.rel (0) target = $region21
    $region20: #{meta_mamba_forward.1} parent=1 // pred_region
      _
    $region21: #{meta_mamba_forward.1} parent=1 // pred_fallthru
      _
    // Predicated region
    $region22: #{meta_mamba_forward.1} parent=1 // pred_check
      _
    $region23: #{meta_mamba_forward.1} parent=1 // pred_check_branch
      %28 = sbr.rel (0) target = $region25
    $region24: #{meta_mamba_forward.1} parent=1 // pred_region
      _
    $region25: #{meta_mamba_forward.1} parent=1 // pred_fallthru
      _
    // Predicated region
    $region26: #{meta_mamba_forward.1} parent=1 // pred_check
      _
    $region27: #{meta_mamba_forward.1} parent=1 // pred_check_branch
      %30 = sbr.rel (0) target = $region29
    $region28: #{meta_mamba_forward.1} parent=1 // pred_region
      _
    $region29: #{meta_mamba_forward.1} parent=1 // pred_fallthru
      _
    // Predicated region
    $region30: #{meta_mamba_forward.1} parent=1 // pred_check
      _
    $region31: #{meta_mamba_forward.1} parent=1 // pred_check_branch
      %32 = sbr.rel (0) target = $region33
    $region32: #{meta_mamba_forward.1} parent=1 // pred_region
      _
    $region33: #{meta_mamba_forward.1} parent=1 // pred_fallthru
      _
    %v34 = vld [vmem:[%s0] sm:$0xff]
    %v35 = vpack.c.bf16 %v34, %v34
    %v36 = vld [vmem:[%s3] sm:$0xff]
    %v37 = vld [vmem:[%s3 + $0x8] sm:$0xff]
    %v38 = vld [vmem:[%s3 + $0x10] sm:$0xff]
    %v39 = vld [vmem:[%s3 + $0x18] sm:$0xff]
    %v44 = vunpack.c.l.b16 %v36
    %v45 = vunpack.c.h.b16 %v36
    %v46 = vunpack.c.l.b16 %v37
    %v47 = vunpack.c.h.b16 %v37
    %v48 = vunpack.c.l.b16 %v38
    %v49 = vunpack.c.h.b16 %v38
    %v50 = vunpack.c.l.b16 %v39
    %v51 = vunpack.c.h.b16 %v39
    %v52 = vpack.c.b16 %v46, %v44
    %v53 = vpack.c.b16 %v47, %v45
    %v54 = vpack.c.b16 %v50, %v48
    %v55 = vpack.c.b16 %v51, %v49
    %vm60 = vcmask 261120
    %v62 = vsel %vm60, %v35, 0
    %64 = vmatprep.subr.bf16.mxu0 %v53
    %65 = vmatpush1.bf16.msra.mxu0 %v52
    %66 = vmatprep.subr.bf16.mxu0 %v55
    %67 = vmatpush1.bf16.msra.mxu0 %v54
    %68 = vmatprep.subr.bf16.mxu0 0
    %69 = vmatpush1.bf16.msra.mxu0 0
    %70 = vmatprep.subr.bf16.mxu0 0
    %71 = vmatpush1.bf16.msra.mxu0 0
    %72 = vmatprep.subr.bf16.mxu0 0
    %73 = vmatpush1.bf16.msra.mxu0 0
    %74 = vmatprep.subr.bf16.mxu0 0
    %75 = vmatpush1.bf16.msra.mxu0 0
    %76 = vmatprep.subr.bf16.mxu0 0
    %77 = vmatpush1.bf16.msra.mxu0 0
    %78 = vmatprep.subr.bf16.mxu0 0
    %79 = vmatpush1.bf16.msra.mxu0 0
    %80 = vmatprep.subr.bf16.mxu0 0
    %81 = vmatpush1.bf16.msra.mxu0 0
    %82 = vmatprep.subr.bf16.mxu0 0
    %83 = vmatpush1.bf16.msra.mxu0 0
    %84 = vmatprep.subr.bf16.mxu0 0
    %85 = vmatpush1.bf16.msra.mxu0 0
    %86 = vmatprep.subr.bf16.mxu0 0
    %87 = vmatpush1.bf16.msra.mxu0 0
    %88 = vmatprep.subr.bf16.mxu0 0
    %89 = vmatpush1.bf16.msra.mxu0 0
    %90 = vmatprep.subr.bf16.mxu0 0
    %91 = vmatpush1.bf16.msra.mxu0 0
    %92 = vmatprep.subr.bf16.mxu0 0
    %93 = vmatpush1.bf16.msra.mxu0 0
    %94 = vmatprep.subr.bf16.mxu0 0
    %95 = vmatpush1.bf16.msra.mxu0 0
    %96 = vmatprep.mubr.bf16.mxu0 0
    %97 = vmatmul.mubr.bf16.gmra.mrb[0].mxu0 %v62
    %v98 = vpop.f32.mrb[0].mxu0
    %v99 = vadd.f32 0.0, %v98
    %v100 = vpop.f32.mrb[0].mxu0
    %v101 = vadd.f32 0.0, %v100
    %v102 = vpop.f32.mrb[0].mxu0
    %v103 = vpop.f32.mrb[0].mxu0
    %104 = vdwg.mxu0
    %v105 = vld [vmem:[%s1 + $0x8] sm:$0xff]
    %v106 = vld [vmem:[%s1 + $0x10] sm:$0xff]
    %v107 = vld [vmem:[%s1 + $0x18] sm:$0xff]
    %v108 = vld [vmem:[%s7] sm:$0x7f]
    %v109 = vlaneseq
    %v110 = vshrl.u32 %v109, 7
    %v111 = vsub.s32 3, %v110
    %v112 = vrot.slane %v108, %v111
    %v113 = vmul.f32 %v99, %v112
    %v114 = vlaneseq
    %v115 = vshrl.u32 %v114, 7
    %v116 = vsub.s32 4, %v115
    %v117 = vrot.slane %v108, %v116
    %v118 = vadd.f32 %v113, %v117
    %v119 = vlaneseq
    %v120 = vshrl.u32 %v119, 7
    %v121 = vsub.s32 0, %v120
    %v122 = vrot.slane %v108, %v121
    %v123 = vmul.f32 %v105, %v122
    %v124 = vadd.f32 %v118, %v123
    %v125 = vlaneseq
    %v126 = vshrl.u32 %v125, 7
    %v127 = vsub.s32 1, %v126
    %v128 = vrot.slane %v108, %v127
    %v129 = vmul.f32 %v106, %v128
    %v130 = vadd.f32 %v124, %v129
    %v131 = vlaneseq
    %v132 = vshrl.u32 %v131, 7
    %v133 = vsub.s32 2, %v132
    %v134 = vrot.slane %v108, %v133
    %v135 = vmul.f32 %v107, %v134
    %v136 = vadd.f32 %v130, %v135
    %v137 = vxor.u32 %v136, 2147483648
    %v138 = vmul.f32 %v137, 1.442695
    %v139 = vpow.pop %v138
    %v140 = vadd.f32 %v139, 1.0
    %v141 = vrcp.pop %v140
    %v142 = vmul.f32 1.0, %v141
    %v143 = vmul.f32 %v136, %v142
    %144 = vst [vmem:[%s9] sm:$0xff] %v105
    %s145 = scalar_lea.vmem %s9, 8
    %146 = vst [vmem:[%s145] sm:$0xff] %v106
    %s147 = scalar_lea.vmem %s9, 16
    %148 = vst [vmem:[%s147] sm:$0xff] %v107
    %s149 = scalar_lea.vmem %s9, 24
    %150 = vst [vmem:[%s149] sm:$0xff] %v99
    %v151 = vpack.c.bf16 %v143, %v143
    %v152 = vld [vmem:[%s4] sm:$0xff]
    %v153 = vld [vmem:[%s4 + $0x8] sm:$0xff]
    %v154 = vld [vmem:[%s4 + $0x10] sm:$0xff]
    %v155 = vld [vmem:[%s4 + $0x18] sm:$0xff]
    %v156 = vld [vmem:[%s4 + $0x20] sm:$0xff]
    %v157 = vld [vmem:[%s4 + $0x28] sm:$0xff]
    %v158 = vld [vmem:[%s4 + $0x30] sm:$0xff]
    %v159 = vld [vmem:[%s4 + $0x38] sm:$0xff]
    %v160 = vld [vmem:[%s4 + $0x40] sm:$0xff]
    %v161 = vld [vmem:[%s4 + $0x48] sm:$0xff]
    %v162 = vld [vmem:[%s4 + $0x50] sm:$0xff]
    %v163 = vld [vmem:[%s4 + $0x58] sm:$0xff]
    %v164 = vld [vmem:[%s4 + $0x60] sm:$0xff]
    %v165 = vld [vmem:[%s4 + $0x68] sm:$0xff]
    %v166 = vld [vmem:[%s4 + $0x70] sm:$0xff]
    %v167 = vld [vmem:[%s4 + $0x78] sm:$0xff]
    %v184 = vunpack.c.l.b16 %v152
    %v185 = vunpack.c.h.b16 %v152
    %v186 = vunpack.c.l.b16 %v153
    %v187 = vunpack.c.h.b16 %v153
    %v188 = vunpack.c.l.b16 %v154
    %v189 = vunpack.c.h.b16 %v154
    %v190 = vunpack.c.l.b16 %v155
    %v191 = vunpack.c.h.b16 %v155
    %v192 = vunpack.c.l.b16 %v156
    %v193 = vunpack.c.h.b16 %v156
    %v194 = vunpack.c.l.b16 %v157
    %v195 = vunpack.c.h.b16 %v157
    %v196 = vunpack.c.l.b16 %v158
    %v197 = vunpack.c.h.b16 %v158
    %v198 = vunpack.c.l.b16 %v159
    %v199 = vunpack.c.h.b16 %v159
    %v200 = vunpack.c.l.b16 %v160
    %v201 = vunpack.c.h.b16 %v160
    %v202 = vunpack.c.l.b16 %v161
    %v203 = vunpack.c.h.b16 %v161
    %v204 = vunpack.c.l.b16 %v162
    %v205 = vunpack.c.h.b16 %v162
    %v206 = vunpack.c.l.b16 %v163
    %v207 = vunpack.c.h.b16 %v163
    %v208 = vunpack.c.l.b16 %v164
    %v209 = vunpack.c.h.b16 %v164
    %v210 = vunpack.c.l.b16 %v165
    %v211 = vunpack.c.h.b16 %v165
    %v212 = vunpack.c.l.b16 %v166
    %v213 = vunpack.c.h.b16 %v166
    %v214 = vunpack.c.l.b16 %v167
    %v215 = vunpack.c.h.b16 %v167
    %v216 = vpack.c.b16 %v186, %v184
    %v217 = vpack.c.b16 %v187, %v185
    %v218 = vpack.c.b16 %v190, %v188
    %v219 = vpack.c.b16 %v191, %v189
    %v220 = vpack.c.b16 %v194, %v192
    %v221 = vpack.c.b16 %v195, %v193
    %v222 = vpack.c.b16 %v198, %v196
    %v223 = vpack.c.b16 %v199, %v197
    %v224 = vpack.c.b16 %v202, %v200
    %v225 = vpack.c.b16 %v203, %v201
    %v226 = vpack.c.b16 %v206, %v204
    %v227 = vpack.c.b16 %v207, %v205
    %v228 = vpack.c.b16 %v210, %v208
    %v229 = vpack.c.b16 %v211, %v209
    %v230 = vpack.c.b16 %v214, %v212
    %v231 = vpack.c.b16 %v215, %v213
    %248 = vmatprep.subr.bf16.mxu0 %v217
    %249 = vmatpush1.bf16.msra.mxu0 %v216
    %250 = vmatprep.subr.bf16.mxu0 %v219
    %251 = vmatpush1.bf16.msra.mxu0 %v218
    %252 = vmatprep.subr.bf16.mxu0 %v221
    %253 = vmatpush1.bf16.msra.mxu0 %v220
    %254 = vmatprep.subr.bf16.mxu0 %v223
    %255 = vmatpush1.bf16.msra.mxu0 %v222
    %256 = vmatprep.subr.bf16.mxu0 %v225
    %257 = vmatpush1.bf16.msra.mxu0 %v224
    %258 = vmatprep.subr.bf16.mxu0 %v227
    %259 = vmatpush1.bf16.msra.mxu0 %v226
    %260 = vmatprep.subr.bf16.mxu0 %v229
    %261 = vmatpush1.bf16.msra.mxu0 %v228
    %262 = vmatprep.subr.bf16.mxu0 %v231
    %263 = vmatpush1.bf16.msra.mxu0 %v230
    %264 = vmatprep.subr.bf16.mxu0 0
    %265 = vmatpush1.bf16.msra.mxu0 0
    %266 = vmatprep.subr.bf16.mxu0 0
    %267 = vmatpush1.bf16.msra.mxu0 0
    %268 = vmatprep.subr.bf16.mxu0 0
    %269 = vmatpush1.bf16.msra.mxu0 0
    %270 = vmatprep.subr.bf16.mxu0 0
    %271 = vmatpush1.bf16.msra.mxu0 0
    %272 = vmatprep.subr.bf16.mxu0 0
    %273 = vmatpush1.bf16.msra.mxu0 0
    %274 = vmatprep.subr.bf16.mxu0 0
    %275 = vmatpush1.bf16.msra.mxu0 0
    %276 = vmatprep.subr.bf16.mxu0 0
    %277 = vmatpush1.bf16.msra.mxu0 0
    %278 = vmatprep.subr.bf16.mxu0 0
    %279 = vmatpush1.bf16.msra.mxu0 0
    %280 = vmatprep.mubr.bf16.mxu0 0
    %281 = vmatmul.mubr.bf16.gmra.mrb[0].mxu0 %v151
    %v282 = vpop.f32.mrb[0].mxu0
    %v283 = vadd.f32 0.0, %v282
    %v284 = vpop.f32.mrb[0].mxu0
    %v285 = vadd.f32 0.0, %v284
    %v286 = vpop.f32.mrb[0].mxu0
    %v287 = vpop.f32.mrb[0].mxu0
    %288 = vdwg.mxu0
    %v289 = vlaneseq
    %v290 = vshrl.u32 %v289, 7
    %v291 = vsub.s32 5, %v290
    %v292 = vrot.slane %v108, %v291
    %v293 = vadd.f32 %v283, %v292
    %v294 = vmin.f32 %v293, 20.0
    %vm295 = vcmp.gt.f32.partialorder %v293, 20.0
    %v296 = vmul.f32 %v294, 1.442695
    %v297 = vpow.pop %v296
    %v298 = vadd.f32 %v297, 1.0
    %v299 = vlog2.pop %v298
    %v300 = vmul.f32 %v299, 0.6931472
    %v301 = vsel %vm295, %v293, %v300
    %v303 = vcombine.high %v301, %v301
    %v305 = vunpack.c.l.s4 1966171168
    %v306 = vunpack.c.0.s8 %v305
    %v307 = vlaneseq
    %v308 = vshrl.u32 %v307, 7
    %v309 = vsub.s32 %v306, %v308
    %v310 = vrot.slane %v301, %v309
    %v312 = vunpack.c.l.s4 1966171168
    %v313 = vunpack.c.0.s8 %v312
    %v314 = vlaneseq
    %v315 = vshrl.u32 %v314, 7
    %v316 = vsub.s32 %v313, %v315
    %v317 = vrot.slane %v303, %v316
    %v318 = vcombine.high %v310, %v310
    %v319 = vcombine.high %v317, %v317
    %v321 = vunpack.c.l.s4 1966171168
    %v322 = vunpack.c.0.s8 %v321
    %v323 = vlaneseq
    %v324 = vshrl.u32 %v323, 7
    %v325 = vsub.s32 %v322, %v324
    %v326 = vrot.slane %v310, %v325
    %v328 = vunpack.c.l.s4 1966171168
    %v329 = vunpack.c.0.s8 %v328
    %v330 = vlaneseq
    %v331 = vshrl.u32 %v330, 7
    %v332 = vsub.s32 %v329, %v331
    %v333 = vrot.slane %v317, %v332
    %v335 = vunpack.c.l.s4 1966171168
    %v336 = vunpack.c.0.s8 %v335
    %v337 = vlaneseq
    %v338 = vshrl.u32 %v337, 7
    %v339 = vsub.s32 %v336, %v338
    %v340 = vrot.slane %v318, %v339
    %v342 = vunpack.c.l.s4 1966171168
    %v343 = vunpack.c.0.s8 %v342
    %v344 = vlaneseq
    %v345 = vshrl.u32 %v344, 7
    %v346 = vsub.s32 %v343, %v345
    %v347 = vrot.slane %v319, %v346
    %v348 = vcombine.high %v326, %v326
    %v349 = vcombine.high %v333, %v333
    %v350 = vcombine.high %v340, %v340
    %v351 = vcombine.high %v347, %v347
    %v352 = vld [vmem:[%s5] sm:$0xff]
    %v353 = vld [vmem:[%s5 + $0x8] sm:$0xff]
    %v354 = vlaneseq
    %v355 = vshrl.u32 %v354, 7
    %v356 = vsub.s32 0, %v355
    %v357 = vrot.slane %v326, %v356
    %v358 = vlaneseq
    %v359 = vshrl.u32 %v358, 7
    %v360 = vsub.s32 0, %v359
    %v361 = vrot.slane %v340, %v360
    %v362 = vlaneseq
    %v363 = vshrl.u32 %v362, 7
    %v364 = vsub.s32 0, %v363
    %v365 = vrot.slane %v348, %v364
    %v366 = vlaneseq
    %v367 = vshrl.u32 %v366, 7
    %v368 = vsub.s32 0, %v367
    %v369 = vrot.slane %v350, %v368
    %v370 = vlaneseq
    %v371 = vshrl.u32 %v370, 7
    %v372 = vsub.s32 0, %v371
    %v373 = vrot.slane %v333, %v372
    %v374 = vlaneseq
    %v375 = vshrl.u32 %v374, 7
    %v376 = vsub.s32 0, %v375
    %v377 = vrot.slane %v347, %v376
    %v378 = vlaneseq
    %v379 = vshrl.u32 %v378, 7
    %v380 = vsub.s32 0, %v379
    %v381 = vrot.slane %v349, %v380
    %v382 = vlaneseq
    %v383 = vshrl.u32 %v382, 7
    %v384 = vsub.s32 0, %v383
    %v385 = vrot.slane %v351, %v384
    %v394 = vmul.f32 %v357, %v352
    %v395 = vmul.f32 %v357, %v353
    %v396 = vmul.f32 %v361, %v352
    %v397 = vmul.f32 %v361, %v353
    %v398 = vmul.f32 %v365, %v352
    %v399 = vmul.f32 %v365, %v353
    %v400 = vmul.f32 %v369, %v352
    %v401 = vmul.f32 %v369, %v353
    %v402 = vmul.f32 %v373, %v352
    %v403 = vmul.f32 %v373, %v353
    %v404 = vmul.f32 %v377, %v352
    %v405 = vmul.f32 %v377, %v353
    %v406 = vmul.f32 %v381, %v352
    %v407 = vmul.f32 %v381, %v353
    %v408 = vmul.f32 %v385, %v352
    %v409 = vmul.f32 %v385, %v353
    %v410 = vmul.f32 %v394, 1.442695
    %v411 = vpow.pop %v410
    %v412 = vmul.f32 %v395, 1.442695
    %v413 = vpow.pop %v412
    %v414 = vmul.f32 %v396, 1.442695
    %v415 = vpow.pop %v414
    %v416 = vmul.f32 %v397, 1.442695
    %v417 = vpow.pop %v416
    %v418 = vmul.f32 %v398, 1.442695
    %v419 = vpow.pop %v418
    %v420 = vmul.f32 %v399, 1.442695
    %v421 = vpow.pop %v420
    %v422 = vmul.f32 %v400, 1.442695
    %v423 = vpow.pop %v422
    %v424 = vmul.f32 %v401, 1.442695
    %v425 = vpow.pop %v424
    %v426 = vmul.f32 %v402, 1.442695
    %v427 = vpow.pop %v426
    %v428 = vmul.f32 %v403, 1.442695
    %v429 = vpow.pop %v428
    %v430 = vmul.f32 %v404, 1.442695
    %v431 = vpow.pop %v430
    %v432 = vmul.f32 %v405, 1.442695
    %v433 = vpow.pop %v432
    %v434 = vmul.f32 %v406, 1.442695
    %v435 = vpow.pop %v434
    %v436 = vmul.f32 %v407, 1.442695
    %v437 = vpow.pop %v436
    %v438 = vmul.f32 %v408, 1.442695
    %v439 = vpow.pop %v438
    %v440 = vmul.f32 %v409, 1.442695
    %v441 = vpow.pop %v440
    %v442 = vmul.f32 %v301, %v143
    %v444 = vcombine.high %v442, %v442
    %v446 = vunpack.c.l.s4 1966171168
    %v447 = vunpack.c.0.s8 %v446
    %v448 = vlaneseq
    %v449 = vshrl.u32 %v448, 7
    %v450 = vsub.s32 %v447, %v449
    %v451 = vrot.slane %v442, %v450
    %v453 = vunpack.c.l.s4 1966171168
    %v454 = vunpack.c.0.s8 %v453
    %v455 = vlaneseq
    %v456 = vshrl.u32 %v455, 7
    %v457 = vsub.s32 %v454, %v456
    %v458 = vrot.slane %v444, %v457
    %v459 = vcombine.high %v451, %v451
    %v460 = vcombine.high %v458, %v458
    %v462 = vunpack.c.l.s4 1966171168
    %v463 = vunpack.c.0.s8 %v462
    %v464 = vlaneseq
    %v465 = vshrl.u32 %v464, 7
    %v466 = vsub.s32 %v463, %v465
    %v467 = vrot.slane %v451, %v466
    %v469 = vunpack.c.l.s4 1966171168
    %v470 = vunpack.c.0.s8 %v469
    %v471 = vlaneseq
    %v472 = vshrl.u32 %v471, 7
    %v473 = vsub.s32 %v470, %v472
    %v474 = vrot.slane %v458, %v473
    %v476 = vunpack.c.l.s4 1966171168
    %v477 = vunpack.c.0.s8 %v476
    %v478 = vlaneseq
    %v479 = vshrl.u32 %v478, 7
    %v480 = vsub.s32 %v477, %v479
    %v481 = vrot.slane %v459, %v480
    %v483 = vunpack.c.l.s4 1966171168
    %v484 = vunpack.c.0.s8 %v483
    %v485 = vlaneseq
    %v486 = vshrl.u32 %v485, 7
    %v487 = vsub.s32 %v484, %v486
    %v488 = vrot.slane %v460, %v487
    %v489 = vcombine.high %v467, %v467
    %v490 = vcombine.high %v474, %v474
    %v491 = vcombine.high %v481, %v481
    %v492 = vcombine.high %v488, %v488
    %v493 = vlaneseq
    %v494 = vshrl.u32 %v493, 7
    %v495 = vsub.s32 0, %v494
    %v496 = vrot.slane %v285, %v495
    %498 = vbcast.lane.b32.xlu0 %v496, 256
    %v499 = vpop.permute.xlu0 %498
    %s501 = sor.u32 256, 8
    %502 = vbcast.lane.b32.xlu0 %v496, %s501
    %v503 = vpop.permute.xlu0 %502
    %v504 = vlaneseq
    %v505 = vshrl.u32 %v504, 7
    %v506 = vsub.s32 1, %v505
    %v507 = vrot.slane %v285, %v506
    %509 = vbcast.lane.b32.xlu0 %v507, 256
    %v510 = vpop.permute.xlu0 %509
    %s512 = sor.u32 256, 8
    %513 = vbcast.lane.b32.xlu0 %v507, %s512
    %v514 = vpop.permute.xlu0 %513
    %v515 = vlaneseq
    %v516 = vshrl.u32 %v515, 7
    %v517 = vsub.s32 2, %v516
    %v518 = vrot.slane %v285, %v517
    %520 = vbcast.lane.b32.xlu0 %v518, 256
    %v521 = vpop.permute.xlu0 %520
    %s523 = sor.u32 256, 8
    %524 = vbcast.lane.b32.xlu0 %v518, %s523
    %v525 = vpop.permute.xlu0 %524
    %v526 = vlaneseq
    %v527 = vshrl.u32 %v526, 7
    %v528 = vsub.s32 3, %v527
    %v529 = vrot.slane %v285, %v528
    %531 = vbcast.lane.b32.xlu0 %v529, 256
    %v532 = vpop.permute.xlu0 %531
    %s534 = sor.u32 256, 8
    %535 = vbcast.lane.b32.xlu0 %v529, %s534
    %v536 = vpop.permute.xlu0 %535
    %v537 = vlaneseq
    %v538 = vshrl.u32 %v537, 7
    %v539 = vsub.s32 4, %v538
    %v540 = vrot.slane %v285, %v539
    %542 = vbcast.lane.b32.xlu0 %v540, 256
    %v543 = vpop.permute.xlu0 %542
    %s545 = sor.u32 256, 8
    %546 = vbcast.lane.b32.xlu0 %v540, %s545
    %v547 = vpop.permute.xlu0 %546
    %v548 = vlaneseq
    %v549 = vshrl.u32 %v548, 7
    %v550 = vsub.s32 5, %v549
    %v551 = vrot.slane %v285, %v550
    %553 = vbcast.lane.b32.xlu0 %v551, 256
    %v554 = vpop.permute.xlu0 %553
    %s556 = sor.u32 256, 8
    %557 = vbcast.lane.b32.xlu0 %v551, %s556
    %v558 = vpop.permute.xlu0 %557
    %v559 = vlaneseq
    %v560 = vshrl.u32 %v559, 7
    %v561 = vsub.s32 6, %v560
    %v562 = vrot.slane %v285, %v561
    %564 = vbcast.lane.b32.xlu0 %v562, 256
    %v565 = vpop.permute.xlu0 %564
    %s567 = sor.u32 256, 8
    %568 = vbcast.lane.b32.xlu0 %v562, %s567
    %v569 = vpop.permute.xlu0 %568
    %v570 = vlaneseq
    %v571 = vshrl.u32 %v570, 7
    %v572 = vsub.s32 7, %v571
    %v573 = vrot.slane %v285, %v572
    %575 = vbcast.lane.b32.xlu0 %v573, 256
    %v576 = vpop.permute.xlu0 %575
    %s578 = sor.u32 256, 8
    %579 = vbcast.lane.b32.xlu0 %v573, %s578
    %v580 = vpop.permute.xlu0 %579
    %v581 = vlaneseq
    %v582 = vshrl.u32 %v581, 7
    %v583 = vsub.s32 0, %v582
    %v584 = vrot.slane %v467, %v583
    %v585 = vlaneseq
    %v586 = vshrl.u32 %v585, 7
    %v587 = vsub.s32 0, %v586
    %v588 = vrot.slane %v481, %v587
    %v589 = vlaneseq
    %v590 = vshrl.u32 %v589, 7
    %v591 = vsub.s32 0, %v590
    %v592 = vrot.slane %v489, %v591
    %v593 = vlaneseq
    %v594 = vshrl.u32 %v593, 7
    %v595 = vsub.s32 0, %v594
    %v596 = vrot.slane %v491, %v595
    %v597 = vlaneseq
    %v598 = vshrl.u32 %v597, 7
    %v599 = vsub.s32 0, %v598
    %v600 = vrot.slane %v474, %v599
    %v601 = vlaneseq
    %v602 = vshrl.u32 %v601, 7
    %v603 = vsub.s32 0, %v602
    %v604 = vrot.slane %v488, %v603
    %v605 = vlaneseq
    %v606 = vshrl.u32 %v605, 7
    %v607 = vsub.s32 0, %v606
    %v608 = vrot.slane %v490, %v607
    %v609 = vlaneseq
    %v610 = vshrl.u32 %v609, 7
    %v611 = vsub.s32 0, %v610
    %v612 = vrot.slane %v492, %v611
    %v621 = vmul.f32 %v584, %v499
    %v622 = vmul.f32 %v584, %v503
    %v623 = vmul.f32 %v588, %v510
    %v624 = vmul.f32 %v588, %v514
    %v625 = vmul.f32 %v592, %v521
    %v626 = vmul.f32 %v592, %v525
    %v627 = vmul.f32 %v596, %v532
    %v628 = vmul.f32 %v596, %v536
    %v629 = vmul.f32 %v600, %v543
    %v630 = vmul.f32 %v600, %v547
    %v631 = vmul.f32 %v604, %v554
    %v632 = vmul.f32 %v604, %v558
    %v633 = vmul.f32 %v608, %v565
    %v634 = vmul.f32 %v608, %v569
    %v635 = vmul.f32 %v612, %v576
    %v636 = vmul.f32 %v612, %v580
    %v637 = vld [vmem:[%s2] sm:$0xff]
    %v638 = vld [vmem:[%s2 + $0x8] sm:$0xff]
    %v639 = vld [vmem:[%s2 + $0x10] sm:$0xff]
    %v640 = vld [vmem:[%s2 + $0x18] sm:$0xff]
    %v641 = vld [vmem:[%s2 + $0x20] sm:$0xff]
    %v642 = vld [vmem:[%s2 + $0x28] sm:$0xff]
    %v643 = vld [vmem:[%s2 + $0x30] sm:$0xff]
    %v644 = vld [vmem:[%s2 + $0x38] sm:$0xff]
    %v645 = vld [vmem:[%s2 + $0x40] sm:$0xff]
    %v646 = vld [vmem:[%s2 + $0x48] sm:$0xff]
    %v647 = vld [vmem:[%s2 + $0x50] sm:$0xff]
    %v648 = vld [vmem:[%s2 + $0x58] sm:$0xff]
    %v649 = vld [vmem:[%s2 + $0x60] sm:$0xff]
    %v650 = vld [vmem:[%s2 + $0x68] sm:$0xff]
    %v651 = vld [vmem:[%s2 + $0x70] sm:$0xff]
    %v652 = vld [vmem:[%s2 + $0x78] sm:$0xff]
    %v653 = vmul.f32 %v637, %v411
    %v654 = vmul.f32 %v638, %v413
    %v655 = vmul.f32 %v639, %v415
    %v656 = vmul.f32 %v640, %v417
    %v657 = vmul.f32 %v641, %v419
    %v658 = vmul.f32 %v642, %v421
    %v659 = vmul.f32 %v643, %v423
    %v660 = vmul.f32 %v644, %v425
    %v661 = vmul.f32 %v645, %v427
    %v662 = vmul.f32 %v646, %v429
    %v663 = vmul.f32 %v647, %v431
    %v664 = vmul.f32 %v648, %v433
    %v665 = vmul.f32 %v649, %v435
    %v666 = vmul.f32 %v650, %v437
    %v667 = vmul.f32 %v651, %v439
    %v668 = vmul.f32 %v652, %v441
    %v669 = vadd.f32 %v653, %v621
    %v670 = vadd.f32 %v654, %v622
    %v671 = vadd.f32 %v655, %v623
    %v672 = vadd.f32 %v656, %v624
    %v673 = vadd.f32 %v657, %v625
    %v674 = vadd.f32 %v658, %v626
    %v675 = vadd.f32 %v659, %v627
    %v676 = vadd.f32 %v660, %v628
    %v677 = vadd.f32 %v661, %v629
    %v678 = vadd.f32 %v662, %v630
    %v679 = vadd.f32 %v663, %v631
    %v680 = vadd.f32 %v664, %v632
    %v681 = vadd.f32 %v665, %v633
    %v682 = vadd.f32 %v666, %v634
    %v683 = vadd.f32 %v667, %v635
    %v684 = vadd.f32 %v668, %v636
    %685 = vst [vmem:[%s10] sm:$0xff] %v669
    %686 = vst [vmem:[%s10 + $0x8] sm:$0xff] %v670
    %687 = vst [vmem:[%s10 + $0x10] sm:$0xff] %v671
    %688 = vst [vmem:[%s10 + $0x18] sm:$0xff] %v672
    %689 = vst [vmem:[%s10 + $0x20] sm:$0xff] %v673
    %690 = vst [vmem:[%s10 + $0x28] sm:$0xff] %v674
    %691 = vst [vmem:[%s10 + $0x30] sm:$0xff] %v675
    %692 = vst [vmem:[%s10 + $0x38] sm:$0xff] %v676
    %693 = vst [vmem:[%s10 + $0x40] sm:$0xff] %v677
    %694 = vst [vmem:[%s10 + $0x48] sm:$0xff] %v678
    %695 = vst [vmem:[%s10 + $0x50] sm:$0xff] %v679
    %696 = vst [vmem:[%s10 + $0x58] sm:$0xff] %v680
    %697 = vst [vmem:[%s10 + $0x60] sm:$0xff] %v681
    %698 = vst [vmem:[%s10 + $0x68] sm:$0xff] %v682
    %699 = vst [vmem:[%s10 + $0x70] sm:$0xff] %v683
    %700 = vst [vmem:[%s10 + $0x78] sm:$0xff] %v684
    %s702 = sor.u32 256, 16
    %703 = vbcast.lane.b32.xlu0 %v496, %s702
    %v704 = vpop.permute.xlu0 %703
    %s706 = sor.u32 256, 24
    %707 = vbcast.lane.b32.xlu0 %v496, %s706
    %v708 = vpop.permute.xlu0 %707
    %s710 = sor.u32 256, 16
    %711 = vbcast.lane.b32.xlu0 %v507, %s710
    %v712 = vpop.permute.xlu0 %711
    %s714 = sor.u32 256, 24
    %715 = vbcast.lane.b32.xlu0 %v507, %s714
    %v716 = vpop.permute.xlu0 %715
    %s718 = sor.u32 256, 16
    %719 = vbcast.lane.b32.xlu0 %v518, %s718
    %v720 = vpop.permute.xlu0 %719
    %s722 = sor.u32 256, 24
    %723 = vbcast.lane.b32.xlu0 %v518, %s722
    %v724 = vpop.permute.xlu0 %723
    %s726 = sor.u32 256, 16
    %727 = vbcast.lane.b32.xlu0 %v529, %s726
    %v728 = vpop.permute.xlu0 %727
    %s730 = sor.u32 256, 24
    %731 = vbcast.lane.b32.xlu0 %v529, %s730
    %v732 = vpop.permute.xlu0 %731
    %s734 = sor.u32 256, 16
    %735 = vbcast.lane.b32.xlu0 %v540, %s734
    %v736 = vpop.permute.xlu0 %735
    %s738 = sor.u32 256, 24
    %739 = vbcast.lane.b32.xlu0 %v540, %s738
    %v740 = vpop.permute.xlu0 %739
    %s742 = sor.u32 256, 16
    %743 = vbcast.lane.b32.xlu0 %v551, %s742
    %v744 = vpop.permute.xlu0 %743
    %s746 = sor.u32 256, 24
    %747 = vbcast.lane.b32.xlu0 %v551, %s746
    %v748 = vpop.permute.xlu0 %747
    %s750 = sor.u32 256, 16
    %751 = vbcast.lane.b32.xlu0 %v562, %s750
    %v752 = vpop.permute.xlu0 %751
    %s754 = sor.u32 256, 24
    %755 = vbcast.lane.b32.xlu0 %v562, %s754
    %v756 = vpop.permute.xlu0 %755
    %s758 = sor.u32 256, 16
    %759 = vbcast.lane.b32.xlu0 %v573, %s758
    %v760 = vpop.permute.xlu0 %759
    %s762 = sor.u32 256, 24
    %763 = vbcast.lane.b32.xlu0 %v573, %s762
    %v764 = vpop.permute.xlu0 %763
    %v765 = vmul.f32 %v669, %v704
    %v766 = vmul.f32 %v670, %v708
    %v767 = vmul.f32 %v671, %v712
    %v768 = vmul.f32 %v672, %v716
    %v769 = vmul.f32 %v673, %v720
    %v770 = vmul.f32 %v674, %v724
    %v771 = vmul.f32 %v675, %v728
    %v772 = vmul.f32 %v676, %v732
    %v773 = vmul.f32 %v677, %v736
    %v774 = vmul.f32 %v678, %v740
    %v775 = vmul.f32 %v679, %v744
    %v776 = vmul.f32 %v680, %v748
    %v777 = vmul.f32 %v681, %v752
    %v778 = vmul.f32 %v682, %v756
    %v779 = vmul.f32 %v683, %v760
    %v780 = vmul.f32 %v684, %v764
    %v781 = vadd.f32 %v765, %v766
    %v782 = vrot.slane %v781, 4
    %v783 = vadd.f32 %v781, %v782
    %v784 = vrot.slane %v783, 2
    %v785 = vadd.f32 %v783, %v784
    %v786 = vrot.slane %v785, 1
    %v787 = vadd.f32 %v785, %v786
    %v788 = vadd.f32 %v767, %v768
    %v789 = vrot.slane %v788, 4
    %v790 = vadd.f32 %v788, %v789
    %v791 = vrot.slane %v790, 2
    %v792 = vadd.f32 %v790, %v791
    %v793 = vrot.slane %v792, 1
    %v794 = vadd.f32 %v792, %v793
    %v795 = vadd.f32 %v769, %v770
    %v796 = vrot.slane %v795, 4
    %v797 = vadd.f32 %v795, %v796
    %v798 = vrot.slane %v797, 2
    %v799 = vadd.f32 %v797, %v798
    %v800 = vrot.slane %v799, 1
    %v801 = vadd.f32 %v799, %v800
    %v802 = vadd.f32 %v771, %v772
    %v803 = vrot.slane %v802, 4
    %v804 = vadd.f32 %v802, %v803
    %v805 = vrot.slane %v804, 2
    %v806 = vadd.f32 %v804, %v805
    %v807 = vrot.slane %v806, 1
    %v808 = vadd.f32 %v806, %v807
    %v809 = vadd.f32 %v773, %v774
    %v810 = vrot.slane %v809, 4
    %v811 = vadd.f32 %v809, %v810
    %v812 = vrot.slane %v811, 2
    %v813 = vadd.f32 %v811, %v812
    %v814 = vrot.slane %v813, 1
    %v815 = vadd.f32 %v813, %v814
    %v816 = vadd.f32 %v775, %v776
    %v817 = vrot.slane %v816, 4
    %v818 = vadd.f32 %v816, %v817
    %v819 = vrot.slane %v818, 2
    %v820 = vadd.f32 %v818, %v819
    %v821 = vrot.slane %v820, 1
    %v822 = vadd.f32 %v820, %v821
    %v823 = vadd.f32 %v777, %v778
    %v824 = vrot.slane %v823, 4
    %v825 = vadd.f32 %v823, %v824
    %v826 = vrot.slane %v825, 2
    %v827 = vadd.f32 %v825, %v826
    %v828 = vrot.slane %v827, 1
    %v829 = vadd.f32 %v827, %v828
    %v830 = vadd.f32 %v779, %v780
    %v831 = vrot.slane %v830, 4
    %v832 = vadd.f32 %v830, %v831
    %v833 = vrot.slane %v832, 2
    %v834 = vadd.f32 %v832, %v833
    %v835 = vrot.slane %v834, 1
    %v836 = vadd.f32 %v834, %v835
    %v837 = vlaneseq
    %v838 = vshrl.u32 %v837, 7
    %v839 = vsub.s32 6, %v838
    %v840 = vrot.slane %v108, %v839
    %v841 = vmul.f32 %v840, %v143
    %v843 = vrot.slane %v841, 1
    %v844 = vrot.slane %v841, 2
    %v845 = vrot.slane %v841, 3
    %v846 = vrot.slane %v841, 4
    %v847 = vrot.slane %v841, 5
    %v848 = vrot.slane %v841, 6
    %v849 = vrot.slane %v841, 7
    %v858 = vadd.f32 %v787, %v841
    %v859 = vadd.f32 %v794, %v843
    %v860 = vadd.f32 %v801, %v844
    %v861 = vadd.f32 %v808, %v845
    %v862 = vadd.f32 %v815, %v846
    %v863 = vadd.f32 %v822, %v847
    %v864 = vadd.f32 %v829, %v848
    %v865 = vadd.f32 %v836, %v849
    %v866 = vxor.u32 %v101, 2147483648
    %v867 = vmul.f32 %v866, 1.442695
    %v868 = vpow.pop %v867
    %v869 = vadd.f32 %v868, 1.0
    %v870 = vrcp.pop %v869
    %v871 = vmul.f32 1.0, %v870
    %v872 = vmul.f32 %v101, %v871
    %v874 = vrot.slane %v872, 1
    %v875 = vrot.slane %v872, 2
    %v876 = vrot.slane %v872, 3
    %v877 = vrot.slane %v872, 4
    %v878 = vrot.slane %v872, 5
    %v879 = vrot.slane %v872, 6
    %v880 = vrot.slane %v872, 7
    %v889 = vmul.f32 %v858, %v872
    %v890 = vmul.f32 %v859, %v874
    %v891 = vmul.f32 %v860, %v875
    %v892 = vmul.f32 %v861, %v876
    %v893 = vmul.f32 %v862, %v877
    %v894 = vmul.f32 %v863, %v878
    %v895 = vmul.f32 %v864, %v879
    %v896 = vmul.f32 %v865, %v880
    %v897 = vpack.c.bf16 %v889, %v889
    %v898 = vpack.c.bf16 %v890, %v890
    %v899 = vpack.c.bf16 %v891, %v891
    %v900 = vpack.c.bf16 %v892, %v892
    %v901 = vpack.c.bf16 %v893, %v893
    %v902 = vpack.c.bf16 %v894, %v894
    %v903 = vpack.c.bf16 %v895, %v895
    %v904 = vpack.c.bf16 %v896, %v896
    %v905 = vld [vmem:[%s6] sm:$0xf]
    %v906 = vld [vmem:[%s6 + $0x4] sm:$0xf]
    %v907 = vld [vmem:[%s6 + $0x8] sm:$0xf]
    %v908 = vld [vmem:[%s6 + $0xc] sm:$0xf]
    %v909 = vld [vmem:[%s6 + $0x10] sm:$0xf]
    %v910 = vld [vmem:[%s6 + $0x14] sm:$0xf]
    %v911 = vld [vmem:[%s6 + $0x18] sm:$0xf]
    %v912 = vld [vmem:[%s6 + $0x1c] sm:$0xf]
    %v913 = vld [vmem:[%s6 + $0x20] sm:$0xf]
    %v914 = vld [vmem:[%s6 + $0x24] sm:$0xf]
    %v915 = vld [vmem:[%s6 + $0x28] sm:$0xf]
    %v916 = vld [vmem:[%s6 + $0x2c] sm:$0xf]
    %v917 = vld [vmem:[%s6 + $0x30] sm:$0xf]
    %v918 = vld [vmem:[%s6 + $0x34] sm:$0xf]
    %v919 = vld [vmem:[%s6 + $0x38] sm:$0xf]
    %v920 = vld [vmem:[%s6 + $0x3c] sm:$0xf]
    %v929 = vunpack.c.l.b16 %v897
    %v930 = vunpack.c.l.b16 %v898
    %v931 = vunpack.c.l.b16 %v899
    %v932 = vunpack.c.l.b16 %v900
    %v933 = vunpack.c.l.b16 %v901
    %v934 = vunpack.c.l.b16 %v902
    %v935 = vunpack.c.l.b16 %v903
    %v936 = vunpack.c.l.b16 %v904
    %v937 = vrot.slane %v930, 7
    %vm938 = vcmask 1041409
    %v939 = vsel %vm938, %v937, %v929
    %v940 = vrot.slane %v931, 6
    %vm941 = vcmask 1042434
    %v942 = vsel %vm941, %v940, %v939
    %v943 = vrot.slane %v932, 5
    %vm944 = vcmask 1043459
    %v945 = vsel %vm944, %v943, %v942
    %v946 = vrot.slane %v933, 4
    %vm947 = vcmask 1044484
    %v948 = vsel %vm947, %v946, %v945
    %v949 = vrot.slane %v934, 3
    %vm950 = vcmask 1045509
    %v951 = vsel %vm950, %v949, %v948
    %v952 = vrot.slane %v935, 2
    %vm953 = vcmask 1046534
    %v954 = vsel %vm953, %v952, %v951
    %v955 = vrot.slane %v936, 1
    %vm956 = vcmask 1047559
    %v957 = vsel %vm956, %v955, %v954
    %v958 = vpack.c.b16 %v957, %v957
    %v976 = vunpack.c.l.b16 %v905
    %v977 = vunpack.c.l.b16 %v906
    %v978 = vunpack.c.l.b16 %v907
    %v979 = vunpack.c.l.b16 %v908
    %v980 = vunpack.c.l.b16 %v909
    %v981 = vunpack.c.l.b16 %v910
    %v982 = vunpack.c.l.b16 %v911
    %v983 = vunpack.c.l.b16 %v912
    %v984 = vunpack.c.l.b16 %v913
    %v985 = vunpack.c.l.b16 %v914
    %v986 = vunpack.c.l.b16 %v915
    %v987 = vunpack.c.l.b16 %v916
    %v988 = vunpack.c.l.b16 %v917
    %v989 = vunpack.c.l.b16 %v918
    %v990 = vunpack.c.l.b16 %v919
    %v991 = vunpack.c.l.b16 %v920
    %v992 = vpack.c.b16 %v977, %v976
    %v993 = vpack.c.b16 %v979, %v978
    %v994 = vpack.c.b16 %v981, %v980
    %v995 = vpack.c.b16 %v983, %v982
    %v996 = vpack.c.b16 %v985, %v984
    %v997 = vpack.c.b16 %v987, %v986
    %v998 = vpack.c.b16 %v989, %v988
    %v999 = vpack.c.b16 %v991, %v990
    %1008 = vmatprep.subr.bf16.mxu0 0
    %1009 = vmatpush1.bf16.msra.mxu0 %v992
    %1010 = vmatprep.subr.bf16.mxu0 0
    %1011 = vmatpush1.bf16.msra.mxu0 %v993
    %1012 = vmatprep.subr.bf16.mxu0 0
    %1013 = vmatpush1.bf16.msra.mxu0 %v994
    %1014 = vmatprep.subr.bf16.mxu0 0
    %1015 = vmatpush1.bf16.msra.mxu0 %v995
    %1016 = vmatprep.subr.bf16.mxu0 0
    %1017 = vmatpush1.bf16.msra.mxu0 %v996
    %1018 = vmatprep.subr.bf16.mxu0 0
    %1019 = vmatpush1.bf16.msra.mxu0 %v997
    %1020 = vmatprep.subr.bf16.mxu0 0
    %1021 = vmatpush1.bf16.msra.mxu0 %v998
    %1022 = vmatprep.subr.bf16.mxu0 0
    %1023 = vmatpush1.bf16.msra.mxu0 %v999
    %1024 = vmatprep.subr.bf16.mxu0 0
    %1025 = vmatpush1.bf16.msra.mxu0 0
    %1026 = vmatprep.subr.bf16.mxu0 0
    %1027 = vmatpush1.bf16.msra.mxu0 0
    %1028 = vmatprep.subr.bf16.mxu0 0
    %1029 = vmatpush1.bf16.msra.mxu0 0
    %1030 = vmatprep.subr.bf16.mxu0 0
    %1031 = vmatpush1.bf16.msra.mxu0 0
    %1032 = vmatprep.subr.bf16.mxu0 0
    %1033 = vmatpush1.bf16.msra.mxu0 0
    %1034 = vmatprep.subr.bf16.mxu0 0
    %1035 = vmatpush1.bf16.msra.mxu0 0
    %1036 = vmatprep.subr.bf16.mxu0 0
    %1037 = vmatpush1.bf16.msra.mxu0 0
    %1038 = vmatprep.subr.bf16.mxu0 0
    %1039 = vmatpush1.bf16.msra.mxu0 0
    %1040 = vmatprep.mubr.bf16.mxu0 0
    %1041 = vmatmul.mubr.bf16.gmra.mrb[0].mxu0 %v958
    %v1042 = vpop.f32.mrb[0].mxu0
    %v1043 = vadd.f32 %v34, %v1042
    %v1044 = vpop.f32.mrb[0].mxu0
    %v1045 = vpop.f32.mrb[0].mxu0
    %v1046 = vpop.f32.mrb[0].mxu0
    %1047 = vdwg.mxu0
    %1048 = vst.msk [vmem:[#allocation2] sm:$0xff] %vm60, %v1043
    // Predicated region
    $region34: #{meta_mamba_forward.1} parent=1 // pred_check
      _
    $region35: #{meta_mamba_forward.1} parent=1 // pred_check_branch
      %1050 = sbr.rel (0) target = $region37
    $region36: #{meta_mamba_forward.1} parent=1 // pred_region
      %s1052 = ssub.s32 128, 128
      %1053 = vsyncadd [#allocation3], %s1052
      %s1055 = sshll.u32 [#allocation2], 4
      %s1056 = int_to_ptr.vmem [resolvable:$true] %s1055
      %1058 = dma.vmem_to_hbm [thread:$0]  %s1056, 128, %s8, [#allocation3]
    $region37: #{meta_mamba_forward.1} parent=1 // pred_fallthru
      _
    // Predicated region
    $region38: #{meta_mamba_forward.1} parent=1 // pred_check
      _
    $region39: #{meta_mamba_forward.1} parent=1 // pred_check_branch
      %1060 = sbr.rel (0) target = $region41
    $region40: #{meta_mamba_forward.1} parent=1 // pred_region
      _
    $region41: #{meta_mamba_forward.1} parent=1 // pred_fallthru
      _
    // Predicated region
    $region42: #{meta_mamba_forward.1} parent=1 // pred_check
      _
    $region43: #{meta_mamba_forward.1} parent=1 // pred_check_branch
      %1062 = sbr.rel (0) target = $region45
    $region44: #{meta_mamba_forward.1} parent=1 // pred_region
      _
    $region45: #{meta_mamba_forward.1} parent=1 // pred_fallthru
      _
    // Predicated region
    $region46: #{meta_mamba_forward.1} parent=1 // pred_check
      _
    $region47: #{meta_mamba_forward.1} parent=1 // pred_check_branch
      %1064 = sbr.rel (0) target = $region49
    $region48: #{meta_mamba_forward.1} parent=1 // pred_region
      %1065 = dma.done [#allocation3], 128
    $region49: #{meta_mamba_forward.1} parent=1 // pred_fallthru
      _
    // Predicated region
    $region50: #{meta_mamba_forward.1} parent=1 // pred_check
      _
    $region51: #{meta_mamba_forward.1} parent=1 // pred_check_branch
      %1067 = sbr.rel (0) target = $region53
    $region52: #{meta_mamba_forward.1} parent=1 // pred_region
      _
    $region53: #{meta_mamba_forward.1} parent=1 // pred_fallthru
      _
    // Predicated region
    $region54: #{meta_mamba_forward.1} parent=1 // pred_check
      _
    $region55: #{meta_mamba_forward.1} parent=1 // pred_check_branch
      %1069 = sbr.rel (0) target = $region57
    $region56: #{meta_mamba_forward.1} parent=1 // pred_region
      _
    $region57: #{meta_mamba_forward.1} parent=1 // pred_fallthru
      _
    %1070 = vsyncpa [#allocation3], 1

</llo_original>
